<compile_context>
chip_gen: v6e
topology: v6e:2x2x1
jax: 0.10.0
libtpu: 0.0.40
codegen_flags: <defaults>
</compile_context>

<pallas_src>
import jax
import jax.numpy as jnp
from jax import lax
from jax.experimental import pallas as pl
from jax.experimental.pallas import tpu as pltpu

EPS = 1e-6
_LANE = 128
_TARGET_BLOCK_BYTES = 2 * 1024 * 1024   # ~2 MiB per input block per grid step


def _vmem_capacity():
    try:
        return int(pltpu.get_tpu_info().vmem_capacity_bytes)
    except Exception:
        return 64 * 1024 * 1024          # conservative default (v7x per-core VMEM)


def _plan(hw_k, C, itemsize, target_block_bytes):
    """Pick (lane tile, fold width, vmem limit) from shape + chip VMEM budget."""
    vmem_cap = _vmem_capacity()
    hw_floor = (hw_k // _LANE) * _LANE               # >= 128 (wrapper pads tiny HW)
    fold = min(4 * _LANE, hw_floor)                  # accumulator lane width
    budget = min(vmem_cap // 2, 48 << 20)            # 2 inputs x double-buffered
    t_vmem = max(_LANE, budget // (4 * C * itemsize))
    t_des = max(_LANE, min(target_block_bytes // (C * itemsize), t_vmem))
    hw_cap = (hw_floor // fold) * fold
    t_hw = max(fold, min((t_des // fold) * fold, hw_cap))

    block_bytes = C * t_hw * itemsize
    out_bytes = 4 * C * fold * 4
    need = 2 * 2 * block_bytes + 2 * out_bytes + (8 << 20)     # + temp headroom
    vmem_limit = int(min(max(need, 16 << 20), int(0.8 * vmem_cap)))
    return t_hw, fold, vmem_limit


def _make_kernel(C, fold, n_fold, t_hw, tps, hw_valid, needs_mask):
    """Per-(split, batch) statistics kernel.

    Blocks: pred/tgt (1, C, t_hw); out (1, 1, 4, C, fold) f32 with rows
    [inter, p_sum, t_sum, ce_sum] as lane-wide partial sums.
    """
    # TODO(synk): for C < 8, pack 8//C pixel groups onto the sublane axis
    # (segmented pltpu.roll max/add reductions) to fill the vregs; skipped here.
    def kernel(pred_ref, tgt_ref, out_ref):
        s = pl.program_id(0)
        t = pl.program_id(2)
        tile_start = (s * tps + t) * t_hw            # global pixel offset of tile

        if needs_mask:
            lane = lax.broadcasted_iota(jnp.int32, (1, fold), 1)
            pix0 = tile_start + lane                 # hoisted out of the chunk loop

        def chunk(f, carry):
            inter_c, psum_c, tsum_c, ce_c = carry
            off = pl.multiple_of(f * fold, fold)
            logits = pred_ref[0, :, pl.ds(off, fold)].astype(jnp.float32)
            tgt_c = tgt_ref[0, :, pl.ds(off, fold)].astype(jnp.float32)
            if needs_mask:
                valid = (pix0 + off) < hw_valid
                logits = jnp.where(valid, logits, 0.0)
                tgt_c = jnp.where(valid, tgt_c, 0.0)

            # Numerically stable softmax / log-softmax across channels (sublanes).
            m = jnp.max(logits, axis=0, keepdims=True)       # (1, fold)
            z = logits - m
            ez = jnp.exp(z)
            se = jnp.sum(ez, axis=0, keepdims=True)          # (1, fold)
            p = ez * (1.0 / se)                              # softmax(predict, 1)
            neg_logp = jnp.log(se) - z                       # -log_softmax
            if needs_mask:
                p = jnp.where(valid, p, 0.0)                 # keep psum exact

            return (inter_c + p * tgt_c,
                    psum_c + p,
                    tsum_c + tgt_c,
                    ce_c + tgt_c * neg_logp)

        z0 = jnp.zeros((C, fold), jnp.float32)
        inter_c, psum_c, tsum_c, ce_c = lax.fori_loop(
            0, n_fold, chunk, (z0, z0, z0, z0))

        # Single narrow RMW per statistic per grid step; assign on the first
        # reduction step (no zero-fill + reload).
        @pl.when(t == 0)
        def _first():
            out_ref[0, 0, 0] = inter_c
            out_ref[0, 0, 1] = psum_c
            out_ref[0, 0, 2] = tsum_c
            out_ref[0, 0, 3] = ce_c

        @pl.when(t != 0)
        def _accumulate():
            out_ref[0, 0, 0] += inter_c
            out_ref[0, 0, 1] += psum_c
            out_ref[0, 0, 2] += tsum_c
            out_ref[0, 0, 3] += ce_c

    return kernel


def exponential_logarithmic_loss(predict, target, w_dice, w_ce, *,
                                 target_block_bytes=_TARGET_BLOCK_BYTES):
    """predict, target: (N, C, H, W) float (f32/bf16/f16); w_dice, w_ce: (2,)."""
    N, C, H, W = predict.shape
    HW = H * W
    itemsize = predict.dtype.itemsize

    # Free reshapes: keep native NCHW layout (no HBM transpose pass).
    pred3 = predict.reshape(N, C, HW)
    tgt3 = target.reshape(N, C, HW)

    # Tiny-image path only: bring the lane dim up to one full 128-lane tile.
    hw_k = HW
    if hw_k < _LANE:
        pad = _LANE - hw_k
        pred3 = jnp.pad(pred3, ((0, 0), (0, 0), (0, pad)))
        tgt3 = jnp.pad(tgt3, ((0, 0), (0, 0), (0, pad)))
        hw_k = _LANE

    t_hw, fold, vmem_limit = _plan(hw_k, C, itemsize, target_block_bytes)
    n_fold = t_hw // fold
    n_blocks = pl.cdiv(hw_k, t_hw)
    needs_mask = (n_blocks * t_hw != HW)

    # v7x megacore: split the pixel range when batch parallelism alone is odd.
    split = 2 if (N % 2 == 1 and n_blocks >= 2 and n_blocks % 2 == 0) else 1
    tps = n_blocks // split

    kernel = _make_kernel(C, fold, n_fold, t_hw, tps, HW, needs_mask)

    # NOTE: on v5e, pipeline_mode=pl.Buffered(3) on the two input BlockSpecs can
    # hide the per-batch-element epilogue bubble if profiling shows exposed DMA.
    stats = pl.pallas_call(
        kernel,
        out_shape=jax.ShapeDtypeStruct((split, N, 4, C, fold), jnp.float32),
        grid_spec=pltpu.PrefetchScalarGridSpec(
            num_scalar_prefetch=0,
            grid=(split, N, tps),
            in_specs=[
                pl.BlockSpec((1, C, t_hw), lambda s, n, t: (n, 0, s * tps + t)),
                pl.BlockSpec((1, C, t_hw), lambda s, n, t: (n, 0, s * tps + t)),
            ],
            out_specs=pl.BlockSpec((1, 1, 4, C, fold),
                                   lambda s, n, t: (s, n, 0, 0, 0)),
        ),
        compiler_params=pltpu.CompilerParams(
            dimension_semantics=("parallel", "parallel", "arbitrary"),
            vmem_limit_bytes=vmem_limit,
        ),
    )(pred3, tgt3)

    # Tiny final combine in plain JAX.
    stats = jnp.sum(stats, axis=(0, 1, 4))               # (4, C)
    inter, psum, tsum, ce_sum = stats[0], stats[1], stats[2], stats[3]

    # Multiclass dice with reduce_batch_first=True.
    sets = psum + tsum
    sets = jnp.where(sets == 0.0, 2.0 * inter, sets)      # PyTorch degenerate case
    dice = jnp.mean((2.0 * inter + EPS) / (sets + EPS))
    dice_l = 1.0 - dice

    # CrossEntropyLoss with probability targets, reduction='mean'.
    ce = jnp.sum(ce_sum) / (N * HW)

    return w_dice * dice_l + w_ce * ce


def _reference(predict, target, w_dice, w_ce):
    """Pure-JAX reference matching the PyTorch forward."""
    N, C, H, W = predict.shape
    p = jax.nn.softmax(predict, axis=1)
    inter = jnp.sum(p * target, axis=(0, 2, 3))                    # per channel
    sets = jnp.sum(p, axis=(0, 2, 3)) + jnp.sum(target, axis=(0, 2, 3))
    sets = jnp.where(sets == 0.0, 2.0 * inter, sets)
    dice = jnp.mean((2.0 * inter + EPS) / (sets + EPS))
    dice_l = 1.0 - dice
    logp = jax.nn.log_softmax(predict, axis=1)
    ce = jnp.sum(-target * logp) / (N * H * W)
    return w_dice * dice_l + w_ce * ce


if __name__ == "__main__":
    w_dice = jnp.ones((2,), dtype=jnp.float32)   # matches torch.ones(2)
    w_ce = jnp.ones((2,), dtype=jnp.float32)

    def run_case(name, N, C, H, W, key, **kw):
        k1, k2 = jax.random.split(key)
        predict = jax.random.normal(k1, (N, C, H, W), dtype=jnp.float32)
        # soft (probability) targets, same shape as predict
        target = jax.nn.softmax(
            jax.random.normal(k2, (N, C, H, W), dtype=jnp.float32), axis=1)
        out = jax.block_until_ready(
            exponential_logarithmic_loss(predict, target, w_dice, w_ce, **kw))
        ref = _reference(predict, target, w_dice, w_ce)
        assert out.shape == (2,), (name, out.shape)
        assert jnp.allclose(out, ref, rtol=1e-5, atol=1e-5), (name, out, ref)

    key = jax.random.PRNGKey(0)
    k1, k2, k3 = jax.random.split(key, 3)

    run_case("base", 2, 4, 16, 16, k1)                      # clean 128-multiple HW
    run_case("masked_tail", 2, 4, 17, 17, k2)               # HW=289: partial tile
    run_case("pixel_split", 1, 4, 128, 128, k3,             # odd batch -> S=2 split
             target_block_bytes=64 * 1024)

    print("KERNEL_OK")
</pallas_src>

<mosaic_0001>
module attributes {stable_mosaic.version = 11 : i64} {
  func.func @kernel(%arg0: i32, %arg1: i32, %arg2: i32, %arg3: memref<1x4x256xf32, #tpu.memory_space<vmem>>, %arg4: memref<1x4x256xf32, #tpu.memory_space<vmem>>, %arg5: memref<1x1x4x4x256xf32, #tpu.memory_space<vmem>>) attributes {dimension_semantics = [#tpu.dimension_semantics<parallel>, #tpu.dimension_semantics<parallel>, #tpu.dimension_semantics<arbitrary>], iteration_bounds = array<i64: 1, 2, 1>, scalar_prefetch = 0 : i64, scratch_operands = 0 : i64, tpu.core_type = #tpu.core_type<tc>, window_params = [{transform_indices = @transform_0, window_bounds = array<i64: 1, 4, 256>}, {transform_indices = @transform_1, window_bounds = array<i64: 1, 4, 256>}, {transform_indices = @transform_2, window_bounds = array<i64: 1, 1, 4, 4, 256>}]} {
    %cst = arith.constant 0.000000e+00 : f32
    %0 = vector.broadcast %cst : f32 to vector<4x256xf32>
    %c0_i32 = arith.constant 0 : i32
    %c256_i32 = arith.constant 256 : i32
    %1 = arith.muli %c0_i32, %c256_i32 : i32
    %2 = tpu.assume_multiple %1, 256 : i32
    %c0 = arith.constant 0 : index
    %c0_0 = arith.constant 0 : index
    %3 = arith.index_cast %2 : i32 to index
    %4 = vector.load %arg3[%c0, %c0_0, %3] : memref<1x4x256xf32, #tpu.memory_space<vmem>>, vector<1x4x256xf32>
    %5 = vector.shape_cast %4 : vector<1x4x256xf32> to vector<4x256xf32>
    %c0_1 = arith.constant 0 : index
    %c0_2 = arith.constant 0 : index
    %6 = arith.index_cast %2 : i32 to index
    %7 = vector.load %arg4[%c0_1, %c0_2, %6] : memref<1x4x256xf32, #tpu.memory_space<vmem>>, vector<1x4x256xf32>
    %8 = vector.shape_cast %7 : vector<1x4x256xf32> to vector<4x256xf32>
    %cst_3 = arith.constant dense<0xFF800000> : vector<256xf32>
    %9 = vector.multi_reduction <maximumf>, %5, %cst_3 [0] : vector<4x256xf32> to vector<256xf32>
    %10 = vector.shape_cast %9 : vector<256xf32> to vector<1x256xf32>
    %11 = vector.broadcast %10 : vector<1x256xf32> to vector<4x256xf32>
    %12 = arith.subf %5, %11 : vector<4x256xf32>
    %13 = math.exp %12 : vector<4x256xf32>
    %cst_4 = arith.constant dense<0.000000e+00> : vector<256xf32>
    %14 = vector.multi_reduction <add>, %13, %cst_4 [0] : vector<4x256xf32> to vector<256xf32>
    %15 = vector.shape_cast %14 : vector<256xf32> to vector<1x256xf32>
    %cst_5 = arith.constant 1.000000e+00 : f32
    %16 = vector.broadcast %cst_5 : f32 to vector<1x256xf32>
    %17 = arith.divf %16, %15 : vector<1x256xf32>
    %18 = vector.broadcast %17 : vector<1x256xf32> to vector<4x256xf32>
    %19 = arith.mulf %13, %18 : vector<4x256xf32>
    %20 = math.log %15 : vector<1x256xf32>
    %21 = vector.broadcast %20 : vector<1x256xf32> to vector<4x256xf32>
    %22 = arith.subf %21, %12 : vector<4x256xf32>
    %23 = arith.mulf %19, %8 : vector<4x256xf32>
    %24 = arith.addf %0, %23 : vector<4x256xf32>
    %25 = arith.addf %0, %19 : vector<4x256xf32>
    %26 = arith.addf %0, %8 : vector<4x256xf32>
    %27 = arith.mulf %8, %22 : vector<4x256xf32>
    %28 = arith.addf %0, %27 : vector<4x256xf32>
    %c1_i32 = arith.constant 1 : i32
    %c0_i32_6 = arith.constant 0 : i32
    %29 = arith.cmpi eq, %arg2, %c0_i32_6 : i32
    %30 = arith.extui %29 : i1 to i32
    %c0_i32_7 = arith.constant 0 : i32
    %31 = arith.cmpi ne, %30, %c0_i32_7 : i32
    scf.if %31 {
      %c0_10 = arith.constant 0 : index
      %c0_11 = arith.constant 0 : index
      %c0_12 = arith.constant 0 : index
      %c0_13 = arith.constant 0 : index
      %c0_14 = arith.constant 0 : index
      %35 = vector.load %arg5[%c0_10, %c0_11, %c0_12, %c0_13, %c0_14] : memref<1x1x4x4x256xf32, #tpu.memory_space<vmem>>, vector<1x1x1x4x256xf32>
      %36 = vector.shape_cast %35 : vector<1x1x1x4x256xf32> to vector<4x256xf32>
      %37 = vector.shape_cast %24 : vector<4x256xf32> to vector<1x1x1x4x256xf32>
      tpu.vector_store %arg5[%c0_10, %c0_11, %c0_12, %c0_13, %c0_14], %37 {strides = array<i32>} : memref<1x1x4x4x256xf32, #tpu.memory_space<vmem>>, vector<1x1x1x4x256xf32>,
      %c0_15 = arith.constant 0 : index
      %c0_16 = arith.constant 0 : index
      %c1 = arith.constant 1 : index
      %c0_17 = arith.constant 0 : index
      %c0_18 = arith.constant 0 : index
      %38 = vector.load %arg5[%c0_15, %c0_16, %c1, %c0_17, %c0_18] : memref<1x1x4x4x256xf32, #tpu.memory_space<vmem>>, vector<1x1x1x4x256xf32>
      %39 = vector.shape_cast %38 : vector<1x1x1x4x256xf32> to vector<4x256xf32>
      %40 = vector.shape_cast %25 : vector<4x256xf32> to vector<1x1x1x4x256xf32>
      tpu.vector_store %arg5[%c0_15, %c0_16, %c1, %c0_17, %c0_18], %40 {strides = array<i32>} : memref<1x1x4x4x256xf32, #tpu.memory_space<vmem>>, vector<1x1x1x4x256xf32>,
      %c0_19 = arith.constant 0 : index
      %c0_20 = arith.constant 0 : index
      %c2 = arith.constant 2 : index
      %c0_21 = arith.constant 0 : index
      %c0_22 = arith.constant 0 : index
      %41 = vector.load %arg5[%c0_19, %c0_20, %c2, %c0_21, %c0_22] : memref<1x1x4x4x256xf32, #tpu.memory_space<vmem>>, vector<1x1x1x4x256xf32>
      %42 = vector.shape_cast %41 : vector<1x1x1x4x256xf32> to vector<4x256xf32>
      %43 = vector.shape_cast %26 : vector<4x256xf32> to vector<1x1x1x4x256xf32>
      tpu.vector_store %arg5[%c0_19, %c0_20, %c2, %c0_21, %c0_22], %43 {strides = array<i32>} : memref<1x1x4x4x256xf32, #tpu.memory_space<vmem>>, vector<1x1x1x4x256xf32>,
      %c0_23 = arith.constant 0 : index
      %c0_24 = arith.constant 0 : index
      %c3 = arith.constant 3 : index
      %c0_25 = arith.constant 0 : index
      %c0_26 = arith.constant 0 : index
      %44 = vector.load %arg5[%c0_23, %c0_24, %c3, %c0_25, %c0_26] : memref<1x1x4x4x256xf32, #tpu.memory_space<vmem>>, vector<1x1x1x4x256xf32>
      %45 = vector.shape_cast %44 : vector<1x1x1x4x256xf32> to vector<4x256xf32>
      %46 = vector.shape_cast %28 : vector<4x256xf32> to vector<1x1x1x4x256xf32>
      tpu.vector_store %arg5[%c0_23, %c0_24, %c3, %c0_25, %c0_26], %46 {strides = array<i32>} : memref<1x1x4x4x256xf32, #tpu.memory_space<vmem>>, vector<1x1x1x4x256xf32>,
    } else {
    }
    %c0_i32_8 = arith.constant 0 : i32
    %32 = arith.cmpi ne, %arg2, %c0_i32_8 : i32
    %33 = arith.extui %32 : i1 to i32
    %c0_i32_9 = arith.constant 0 : i32
    %34 = arith.cmpi ne, %33, %c0_i32_9 : i32
    scf.if %34 {
      %c0_10 = arith.constant 0 : index
      %c0_11 = arith.constant 0 : index
      %c0_12 = arith.constant 0 : index
      %c0_13 = arith.constant 0 : index
      %c0_14 = arith.constant 0 : index
      %35 = vector.load %arg5[%c0_10, %c0_11, %c0_12, %c0_13, %c0_14] : memref<1x1x4x4x256xf32, #tpu.memory_space<vmem>>, vector<1x1x1x4x256xf32>
      %36 = vector.shape_cast %35 : vector<1x1x1x4x256xf32> to vector<4x256xf32>
      %37 = arith.addf %36, %24 : vector<4x256xf32>
      %c0_15 = arith.constant 0 : index
      %c0_16 = arith.constant 0 : index
      %c0_17 = arith.constant 0 : index
      %c0_18 = arith.constant 0 : index
      %c0_19 = arith.constant 0 : index
      %38 = vector.load %arg5[%c0_15, %c0_16, %c0_17, %c0_18, %c0_19] : memref<1x1x4x4x256xf32, #tpu.memory_space<vmem>>, vector<1x1x1x4x256xf32>
      %39 = vector.shape_cast %38 : vector<1x1x1x4x256xf32> to vector<4x256xf32>
      %40 = vector.shape_cast %37 : vector<4x256xf32> to vector<1x1x1x4x256xf32>
      tpu.vector_store %arg5[%c0_15, %c0_16, %c0_17, %c0_18, %c0_19], %40 {strides = array<i32>} : memref<1x1x4x4x256xf32, #tpu.memory_space<vmem>>, vector<1x1x1x4x256xf32>,
      %c0_20 = arith.constant 0 : index
      %c0_21 = arith.constant 0 : index
      %c1 = arith.constant 1 : index
      %c0_22 = arith.constant 0 : index
      %c0_23 = arith.constant 0 : index
      %41 = vector.load %arg5[%c0_20, %c0_21, %c1, %c0_22, %c0_23] : memref<1x1x4x4x256xf32, #tpu.memory_space<vmem>>, vector<1x1x1x4x256xf32>
      %42 = vector.shape_cast %41 : vector<1x1x1x4x256xf32> to vector<4x256xf32>
      %43 = arith.addf %42, %25 : vector<4x256xf32>
      %c0_24 = arith.constant 0 : index
      %c0_25 = arith.constant 0 : index
      %c1_26 = arith.constant 1 : index
      %c0_27 = arith.constant 0 : index
      %c0_28 = arith.constant 0 : index
      %44 = vector.load %arg5[%c0_24, %c0_25, %c1_26, %c0_27, %c0_28] : memref<1x1x4x4x256xf32, #tpu.memory_space<vmem>>, vector<1x1x1x4x256xf32>
      %45 = vector.shape_cast %44 : vector<1x1x1x4x256xf32> to vector<4x256xf32>
      %46 = vector.shape_cast %43 : vector<4x256xf32> to vector<1x1x1x4x256xf32>
      tpu.vector_store %arg5[%c0_24, %c0_25, %c1_26, %c0_27, %c0_28], %46 {strides = array<i32>} : memref<1x1x4x4x256xf32, #tpu.memory_space<vmem>>, vector<1x1x1x4x256xf32>,
      %c0_29 = arith.constant 0 : index
      %c0_30 = arith.constant 0 : index
      %c2 = arith.constant 2 : index
      %c0_31 = arith.constant 0 : index
      %c0_32 = arith.constant 0 : index
      %47 = vector.load %arg5[%c0_29, %c0_30, %c2, %c0_31, %c0_32] : memref<1x1x4x4x256xf32, #tpu.memory_space<vmem>>, vector<1x1x1x4x256xf32>
      %48 = vector.shape_cast %47 : vector<1x1x1x4x256xf32> to vector<4x256xf32>
      %49 = arith.addf %48, %26 : vector<4x256xf32>
      %c0_33 = arith.constant 0 : index
      %c0_34 = arith.constant 0 : index
      %c2_35 = arith.constant 2 : index
      %c0_36 = arith.constant 0 : index
      %c0_37 = arith.constant 0 : index
      %50 = vector.load %arg5[%c0_33, %c0_34, %c2_35, %c0_36, %c0_37] : memref<1x1x4x4x256xf32, #tpu.memory_space<vmem>>, vector<1x1x1x4x256xf32>
      %51 = vector.shape_cast %50 : vector<1x1x1x4x256xf32> to vector<4x256xf32>
      %52 = vector.shape_cast %49 : vector<4x256xf32> to vector<1x1x1x4x256xf32>
      tpu.vector_store %arg5[%c0_33, %c0_34, %c2_35, %c0_36, %c0_37], %52 {strides = array<i32>} : memref<1x1x4x4x256xf32, #tpu.memory_space<vmem>>, vector<1x1x1x4x256xf32>,
      %c0_38 = arith.constant 0 : index
      %c0_39 = arith.constant 0 : index
      %c3 = arith.constant 3 : index
      %c0_40 = arith.constant 0 : index
      %c0_41 = arith.constant 0 : index
      %53 = vector.load %arg5[%c0_38, %c0_39, %c3, %c0_40, %c0_41] : memref<1x1x4x4x256xf32, #tpu.memory_space<vmem>>, vector<1x1x1x4x256xf32>
      %54 = vector.shape_cast %53 : vector<1x1x1x4x256xf32> to vector<4x256xf32>
      %55 = arith.addf %54, %28 : vector<4x256xf32>
      %c0_42 = arith.constant 0 : index
      %c0_43 = arith.constant 0 : index
      %c3_44 = arith.constant 3 : index
      %c0_45 = arith.constant 0 : index
      %c0_46 = arith.constant 0 : index
      %56 = vector.load %arg5[%c0_42, %c0_43, %c3_44, %c0_45, %c0_46] : memref<1x1x4x4x256xf32, #tpu.memory_space<vmem>>, vector<1x1x1x4x256xf32>
      %57 = vector.shape_cast %56 : vector<1x1x1x4x256xf32> to vector<4x256xf32>
      %58 = vector.shape_cast %55 : vector<4x256xf32> to vector<1x1x1x4x256xf32>
      tpu.vector_store %arg5[%c0_42, %c0_43, %c3_44, %c0_45, %c0_46], %58 {strides = array<i32>} : memref<1x1x4x4x256xf32, #tpu.memory_space<vmem>>, vector<1x1x1x4x256xf32>,
    } else {
    }
    return
  }
  func.func @transform_0(%arg0: i32, %arg1: i32, %arg2: i32) -> (i32, i32, i32) {
    %c1_i32 = arith.constant 1 : i32
    %0 = arith.muli %arg0, %c1_i32 : i32
    %1 = arith.addi %0, %arg2 : i32
    %c0_i32 = arith.constant 0 : i32
    %c0_i32_0 = arith.constant 0 : i32
    return %arg1, %c0_i32, %1 : i32, i32, i32
  }
  func.func @transform_1(%arg0: i32, %arg1: i32, %arg2: i32) -> (i32, i32, i32) {
    %c1_i32 = arith.constant 1 : i32
    %0 = arith.muli %arg0, %c1_i32 : i32
    %1 = arith.addi %0, %arg2 : i32
    %c0_i32 = arith.constant 0 : i32
    %c0_i32_0 = arith.constant 0 : i32
    return %arg1, %c0_i32, %1 : i32, i32, i32
  }
  func.func @transform_2(%arg0: i32, %arg1: i32, %arg2: i32) -> (i32, i32, i32, i32, i32) {
    %c0_i32 = arith.constant 0 : i32
    %c0_i32_0 = arith.constant 0 : i32
    %c0_i32_1 = arith.constant 0 : i32
    %c0_i32_2 = arith.constant 0 : i32
    return %arg0, %arg1, %c0_i32, %c0_i32_0, %c0_i32_1 : i32, i32, i32, i32, i32
  }
}

</mosaic_0001>

<llo_original>
// kernel: tpu_custom_call.1
$region0: #{tpu_custom_call.1}
  #allocation0 [shape = 'u32[]', space=smem, size = 0x4, offset = 0x4, fixed_abs, tag = 'smem constant byte address 0x4 - core index']
  #allocation1 [shape = 'u32[144,128]{1,0:T(1,128)}', space=vmem, size = 0x12000, scoped, tag = 'internal scratch']
  %s0 = inlined_call_operand.hbm [shape: f32[2,4,256], index: 0, kind: input, shape index: {}]
  %s1 = inlined_call_operand.hbm [shape: f32[2,4,256], index: 1, kind: input, shape index: {}]
  %s2 = inlined_call_operand.hbm [shape: f32[1,2,4,4,256], index: 2, kind: output, shape index: {}]
  %s3 = sld [smem:[#allocation0]]
  $region57: #{tpu_custom_call.1} parent=0
    _
  %s5 = ssub.s32 1, %s3
  %s6 = scalar_select 0, %s5, %s3
  $region1: #{tpu_custom_call.1} parent=0
    #allocation2 [shape = 'u8[8192]{0}', space=vmem, size = 0x2000, scoped, tag = 'input window, operand 0']
    #allocation3 [shape = 's32[2]{0}', space=sflag, size = 0x8, scoped, tag = 'scoped memory for tpu_custom_call.1']
    #allocation4 [shape = 's32[2]{0}', space=sflag, size = 0x8, scoped, tag = 'scoped memory for tpu_custom_call.1']
    #allocation5 [shape = 'u8[8192]{0}', space=vmem, size = 0x2000, scoped, tag = 'input window, operand 1']
    #allocation6 [shape = 's32[2]{0}', space=sflag, size = 0x8, scoped, tag = 'scoped memory for tpu_custom_call.1']
    #allocation7 [shape = 'u8[32768]{0}', space=vmem, size = 0x8000, scoped, tag = 'output window, operand 0']
    %7 = vsyncpa [#allocation3], 0
    %s8 = scalar_lea.sflag [#allocation3], 1
    %9 = vsyncpa %s8, 0
    %10 = vsyncpa [#allocation6], 0
    %s11 = scalar_lea.sflag [#allocation6], 1
    %12 = vsyncpa %s11, 0
    %13 = vsyncpa [#allocation4], 0
    %s14 = scalar_lea.sflag [#allocation4], 1
    %15 = vsyncpa %s14, 0
    loop: start=0, step=1, limit=4
    $region2: #{tpu_custom_call.1} parent=1 // loop_pre_header
      _
    $region3: #{tpu_custom_call.1} parent=1 // loop_header
      %s17 = sphi 0, %s21
      %p18 = scmp.ge.s32.totalorder %s17, 4
      %s24 = sphi 0, %s43
      %s25 = sphi 0, %s39
      %s26 = sphi 0, %s35
      %s27 = sphi 0, %s24
      %s28 = sphi 0, %s25
      %s29 = sphi 0, %s26
      %s30 = sphi 0, %s27
      %s31 = sphi 0, %s28
      %s32 = sphi 0, %s29
      %s50 = sphi 0, %s52
      %s53 = sphi 0, %s50
      %s54 = sphi 0, %s53
      %s70 = sphi 0, %s54
      %s80 = sphi 0, %s82
      %s83 = sphi 0, %s80
      %s84 = sphi 0, %s83
      %s100 = sphi 0, %s84
      %s108 = sphi 0, %s110
      %s111 = sphi 0, %s108
      %s112 = sphi 0, %s111
      %s128 = sphi 0, %s112
    $region4: #{tpu_custom_call.1} parent=1 // loop_header_branch
      %20 = sbr.rel (%p18) target = $region8
    $region5: #{tpu_custom_call.1} parent=1 // loop_body
      %s22 = ssub.s32 %s17, 1
      %s23 = ssub.s32 %s17, 2
      %s33 = sadd.s32 1, %s26
      %p34 = scmp.ge.s32.totalorder %s33, 1
      %s35 = scalar_select %p34, 0, %s33
      %s36 = sadd.s32 1, %s25
      %s37 = scalar_select %p34, %s36, %s25
      %p38 = scmp.ge.s32.totalorder %s37, 2
      %s39 = scalar_select %p38, 0, %s37
      %s40 = sadd.s32 1, %s24
      %s41 = scalar_select %p38, %s40, %s24
      %p42 = scmp.ge.s32.totalorder %s41, 1
      %s43 = scalar_select %p42, 0, %s41
      %s44 = sadd.s32 %s24, %s26
      %s45 = sadd.s32 %s43, %s35
      %s46 = ssub.s32 %s25, %s39
      %s47 = ssub.s32 %s44, %s45
      %s48 = sor.u32 %s46, %s47
      %p49 = scmp.eq.s32.totalorder %s48, 0
      %s51 = sadd.s32 %s50, 1
      %s52 = scalar_select %p49, %s50, %s51
      %p55 = pneg %p49
      %p56 = scmp.eq.s32.totalorder %s17, 1
      %p57 = por %p55, %p56
      %p58 = scmp.ne.s32.totalorder %s50, %s53
      %p59 = scmp.eq.s32.totalorder %s17, 0
      %p60 = por %p58, %p59
      %p61 = scmp.ne.s32.totalorder %s50, %s53
      %p62 = scmp.eq.s32.totalorder %s22, 1
      %p63 = por %p61, %p62
      %p64 = scmp.ne.s32.totalorder %s53, %s54
      %p65 = scmp.eq.s32.totalorder %s22, 0
      %p66 = por %p64, %p65
      %p67 = scmp.ne.s32.totalorder %s53, %s54
      %p68 = scmp.eq.s32.totalorder %s23, 1
      %p69 = por %p67, %p68
      %p71 = scmp.ne.s32.totalorder %s54, %s70
      %p72 = scmp.eq.s32.totalorder %s23, 0
      %p73 = por %p71, %p72
      %s74 = sadd.s32 %s24, %s26
      %s75 = sadd.s32 %s43, %s35
      %s76 = ssub.s32 %s25, %s39
      %s77 = ssub.s32 %s74, %s75
      %s78 = sor.u32 %s76, %s77
      %p79 = scmp.eq.s32.totalorder %s78, 0
      %s81 = sadd.s32 %s80, 1
      %s82 = scalar_select %p79, %s80, %s81
      %p85 = pneg %p79
      %p86 = scmp.eq.s32.totalorder %s17, 1
      %p87 = por %p85, %p86
      %p88 = scmp.ne.s32.totalorder %s80, %s83
      %p89 = scmp.eq.s32.totalorder %s17, 0
      %p90 = por %p88, %p89
      %p91 = scmp.ne.s32.totalorder %s80, %s83
      %p92 = scmp.eq.s32.totalorder %s22, 1
      %p93 = por %p91, %p92
      %p94 = scmp.ne.s32.totalorder %s83, %s84
      %p95 = scmp.eq.s32.totalorder %s22, 0
      %p96 = por %p94, %p95
      %p97 = scmp.ne.s32.totalorder %s83, %s84
      %p98 = scmp.eq.s32.totalorder %s23, 1
      %p99 = por %p97, %p98
      %p101 = scmp.ne.s32.totalorder %s84, %s100
      %p102 = scmp.eq.s32.totalorder %s23, 0
      %p103 = por %p101, %p102
      %s104 = ssub.s32 %s24, %s43
      %s105 = ssub.s32 %s25, %s39
      %s106 = sor.u32 %s104, %s105
      %p107 = scmp.eq.s32.totalorder %s106, 0
      %s109 = sadd.s32 %s108, 1
      %s110 = scalar_select %p107, %s108, %s109
      %p113 = pneg %p107
      %p114 = scmp.eq.s32.totalorder %s17, 1
      %p115 = por %p113, %p114
      %p116 = scmp.ne.s32.totalorder %s108, %s111
      %p117 = scmp.eq.s32.totalorder %s17, 0
      %p118 = por %p116, %p117
      %p119 = scmp.ne.s32.totalorder %s108, %s111
      %p120 = scmp.eq.s32.totalorder %s22, 1
      %p121 = por %p119, %p120
      %p122 = scmp.ne.s32.totalorder %s111, %s112
      %p123 = scmp.eq.s32.totalorder %s22, 0
      %p124 = por %p122, %p123
      %p125 = scmp.ne.s32.totalorder %s111, %s112
      %p126 = scmp.eq.s32.totalorder %s23, 1
      %p127 = por %p125, %p126
      %p129 = scmp.ne.s32.totalorder %s112, %s128
      %p130 = scmp.eq.s32.totalorder %s23, 0
      %p131 = por %p129, %p130
      %p132 = scmp.le.s32.totalorder 1, %s17
      %p133 = scmp.lt.s32.totalorder %s17, 3
      %p134 = pnand %p132, %p133
      %p135 = pneg %p134
      // Predicated region
      $region9: #{tpu_custom_call.1} parent=5 // pred_check
        _
      $region10: #{tpu_custom_call.1} parent=5 // pred_check_branch
        %137 = sbr.rel (%p134) target = $region12
      $region11: #{tpu_custom_call.1} parent=5 // pred_region
        %s138 = ssub.s32 %s17, 1
      $region12: #{tpu_custom_call.1} parent=5 // pred_fallthru
        _
      %p139 = scmp.lt.s32.totalorder %s17, 2
      // Predicated region
      $region13: #{tpu_custom_call.1} parent=5 // pred_check
        %p140 = pneg %p139
      $region14: #{tpu_custom_call.1} parent=5 // pred_check_branch
        %142 = sbr.rel (%p140) target = $region16
      $region15: #{tpu_custom_call.1} parent=5 // pred_region
        // Predicated region
        $region17: #{tpu_custom_call.1} parent=15 // pred_check
          %p143 = pneg %p60
        $region18: #{tpu_custom_call.1} parent=15 // pred_check_branch
          %145 = sbr.rel (%p143) target = $region20
        $region19: #{tpu_custom_call.1} parent=15 // pred_region
          %s146 = sand.u32 %s50, 1
          %s147 = scalar_lea.sflag [#allocation3], %s146
          %s148 = sand.u32 %s50, 1
          %s149 = smul.addr %s148, 8
          %s150 = scalar_lea.vmem [#allocation2], %s149
          %s151 = sadd.s32 %s24, %s26
          %s152 = smul.u32 2, %s151
          %s154 = ssub.s32 128, 128
          %155 = vsyncadd %s147, %s154
          %s156 = smul.addr %s25, 2
          %s157 = sadd.s32 %s152, %s156
          %s158 = smul.addr %s157, 64
          %s159 = scalar_lea.hbm %s0, %s158
          %s161 = sshll.u32 %s150, 4
          %s162 = int_to_ptr.vmem [resolvable:$true] %s161
          %164 = dma.hbm_to_vmem [thread:$0]  %s159, 128, %s162, %s147
        $region20: #{tpu_custom_call.1} parent=15 // pred_fallthru
          _
        // Predicated region
        $region21: #{tpu_custom_call.1} parent=15 // pred_check
          %p165 = pneg %p90
        $region22: #{tpu_custom_call.1} parent=15 // pred_check_branch
          %167 = sbr.rel (%p165) target = $region24
        $region23: #{tpu_custom_call.1} parent=15 // pred_region
          %s168 = sand.u32 %s80, 1
          %s169 = scalar_lea.sflag [#allocation6], %s168
          %s170 = sand.u32 %s80, 1
          %s171 = smul.addr %s170, 8
          %s172 = scalar_lea.vmem [#allocation5], %s171
          %s173 = sadd.s32 %s24, %s26
          %s174 = smul.u32 2, %s173
          %s176 = ssub.s32 128, 128
          %177 = vsyncadd %s169, %s176
          %s178 = smul.addr %s25, 2
          %s179 = sadd.s32 %s174, %s178
          %s180 = smul.addr %s179, 64
          %s181 = scalar_lea.hbm %s1, %s180
          %s183 = sshll.u32 %s172, 4
          %s184 = int_to_ptr.vmem [resolvable:$true] %s183
          %186 = dma.hbm_to_vmem [thread:$0]  %s181, 128, %s184, %s169
        $region24: #{tpu_custom_call.1} parent=15 // pred_fallthru
          _
      $region16: #{tpu_custom_call.1} parent=5 // pred_fallthru
        _
      %p187 = scmp.le.s32.totalorder 1, %s17
      %p188 = scmp.lt.s32.totalorder %s17, 3
      %p189 = pnand %p187, %p188
      %p190 = pneg %p189
      // Predicated region
      $region25: #{tpu_custom_call.1} parent=5 // pred_check
        _
      $region26: #{tpu_custom_call.1} parent=5 // pred_check_branch
        %192 = sbr.rel (%p189) target = $region28
      $region27: #{tpu_custom_call.1} parent=5 // pred_region
        %s193 = ssub.s32 %s17, 1
        %s194 = sand.u32 %s53, 1
        %s195 = scalar_lea.sflag [#allocation3], %s194
        %s196 = sand.u32 %s53, 1
        %s197 = smul.addr %s196, 8
        %s198 = scalar_lea.vmem [#allocation2], %s197
        // Predicated region
        $region29: #{tpu_custom_call.1} parent=27 // pred_check
          %p199 = pneg %p66
        $region30: #{tpu_custom_call.1} parent=27 // pred_check_branch
          %201 = sbr.rel (%p199) target = $region32
        $region31: #{tpu_custom_call.1} parent=27 // pred_region
          %202 = dma.done %s195, 128
        $region32: #{tpu_custom_call.1} parent=27 // pred_fallthru
          _
        %s203 = sand.u32 %s83, 1
        %s204 = scalar_lea.sflag [#allocation6], %s203
        %s205 = sand.u32 %s83, 1
        %s206 = smul.addr %s205, 8
        %s207 = scalar_lea.vmem [#allocation5], %s206
        // Predicated region
        $region33: #{tpu_custom_call.1} parent=27 // pred_check
          %p208 = pneg %p96
        $region34: #{tpu_custom_call.1} parent=27 // pred_check_branch
          %210 = sbr.rel (%p208) target = $region36
        $region35: #{tpu_custom_call.1} parent=27 // pred_region
          %211 = dma.done %s204, 128
        $region36: #{tpu_custom_call.1} parent=27 // pred_fallthru
          _
        %s212 = sand.u32 %s53, 1
        %s213 = scalar_lea.sflag [#allocation3], %s212
        %s214 = sand.u32 %s53, 1
        %s215 = smul.addr %s214, 8
        %s216 = scalar_lea.vmem [#allocation2], %s215
        %p217 = pneg %p66
        %p218 = pneg %p63
        %s219 = sand.u32 %s83, 1
        %s220 = scalar_lea.sflag [#allocation6], %s219
        %s221 = sand.u32 %s83, 1
        %s222 = smul.addr %s221, 8
        %s223 = scalar_lea.vmem [#allocation5], %s222
        %p224 = pneg %p96
        %p225 = pneg %p93
        %p226 = pneg %p124
        %p227 = pneg %p121
        %s228 = sand.u32 %s111, 1
        %s229 = scalar_lea.sflag [#allocation4], %s228
        %s230 = sand.u32 %s111, 1
        %s231 = smul.addr %s230, 32
        %s232 = scalar_lea.vmem [#allocation7], %s231
        %s233 = sadd.s32 %s27, %s29
        %s234 = smul.u32 2, %s233
        %s235 = sadd.s32 %s27, %s29
        %s236 = smul.u32 2, %s235
        %v237 = vld [vmem:[%s198] sm:$0xff]
        %v238 = vld [vmem:[%s207] sm:$0xff]
        %v240 = vcombine.high %v237, %v237
        %vm242 = vcmask 1043456
        %v243 = vsel %vm242, %v237, -inf
        %v244 = vrot.slane %v243, 4
        %v245 = vmax.f32 %v243, %v244
        %v246 = vrot.slane %v245, 2
        %v247 = vmax.f32 %v245, %v246
        %v248 = vrot.slane %v247, 1
        %v249 = vmax.f32 %v247, %v248
        %v250 = vsel %vm242, %v240, -inf
        %v251 = vrot.slane %v250, 4
        %v252 = vmax.f32 %v250, %v251
        %v253 = vrot.slane %v252, 2
        %v254 = vmax.f32 %v252, %v253
        %v255 = vrot.slane %v254, 1
        %v256 = vmax.f32 %v254, %v255
        %v259 = vcombine.low %v249, %v256
        %v261 = vsub.f32 %v237, %v259
        %v262 = vmul.f32 %v261, 1.442695
        %v263 = vpow.pop %v262
        %v265 = vcombine.high %v263, %v263
        %v267 = vsel %vm242, %v263, 0.0
        %v268 = vrot.slane %v267, 4
        %v269 = vadd.f32 %v267, %v268
        %v270 = vrot.slane %v269, 2
        %v271 = vadd.f32 %v269, %v270
        %v272 = vrot.slane %v271, 1
        %v273 = vadd.f32 %v271, %v272
        %v274 = vsel %vm242, %v265, 0.0
        %v275 = vrot.slane %v274, 4
        %v276 = vadd.f32 %v274, %v275
        %v277 = vrot.slane %v276, 2
        %v278 = vadd.f32 %v276, %v277
        %v279 = vrot.slane %v278, 1
        %v280 = vadd.f32 %v278, %v279
        %v281 = vrcp.pop %v273
        %v282 = vmul.f32 1.0, %v281
        %v283 = vrcp.pop %v280
        %v284 = vmul.f32 1.0, %v283
        %v287 = vcombine.low %v282, %v284
        %v289 = vmul.f32 %v263, %v287
        %v290 = vlog2.pop %v273
        %v291 = vmul.f32 %v290, 0.6931472
        %v292 = vlog2.pop %v280
        %v293 = vmul.f32 %v292, 0.6931472
        %v295 = vcombine.high %v261, %v261
        %v297 = vsub.f32 %v291, %v261
        %v298 = vsub.f32 %v293, %v295
        %v299 = vmul.f32 %v289, %v238
        %v300 = vadd.f32 %v299, 0.0
        %v301 = vadd.f32 %v289, 0.0
        %v302 = vadd.f32 %v238, 0.0
        %v305 = vcombine.low %v297, %v298
        %v307 = vmul.f32 %v238, %v305
        %v308 = vadd.f32 %v307, 0.0
        %p309 = scmp.eq.s32.totalorder %s29, 0
        // Predicated region
        $region37: #{tpu_custom_call.1} parent=27 // pred_check
          %p310 = pneg %p309
        $region38: #{tpu_custom_call.1} parent=27 // pred_check_branch
          %312 = sbr.rel (%p310) target = $region40
        $region39: #{tpu_custom_call.1} parent=27 // pred_region
          %313 = vst [vmem:[%s232] sm:$0xff] %v300
          %s314 = scalar_lea.vmem %s232, 8 [#allocation7]
          %315 = vst [vmem:[%s314] sm:$0xff] %v301
          %s316 = scalar_lea.vmem %s232, 16 [#allocation7]
          %317 = vst [vmem:[%s316] sm:$0xff] %v302
          %s318 = scalar_lea.vmem %s232, 24 [#allocation7]
          %319 = vst [vmem:[%s318] sm:$0xff] %v308
        $region40: #{tpu_custom_call.1} parent=27 // pred_fallthru
          _
        %p320 = scmp.ne.s32.totalorder %s29, 0
        // Predicated region
        $region41: #{tpu_custom_call.1} parent=27 // pred_check
          %p321 = pneg %p320
        $region42: #{tpu_custom_call.1} parent=27 // pred_check_branch
          %323 = sbr.rel (%p321) target = $region44
        $region43: #{tpu_custom_call.1} parent=27 // pred_region
          %v324 = vld [vmem:[%s232] sm:$0xff]
          %v325 = vadd.f32 %v324, %v300
          %326 = vst [vmem:[%s232] sm:$0xff] %v325
          %s327 = scalar_lea.vmem %s232, 8 [#allocation7]
          %v328 = vld [vmem:[%s327] sm:$0xff]
          %v329 = vadd.f32 %v328, %v301
          %330 = vst [vmem:[%s327] sm:$0xff] %v329
          %s331 = scalar_lea.vmem %s232, 16 [#allocation7]
          %v332 = vld [vmem:[%s331] sm:$0xff]
          %v333 = vadd.f32 %v332, %v302
          %334 = vst [vmem:[%s331] sm:$0xff] %v333
          %s335 = scalar_lea.vmem %s232, 24 [#allocation7]
          %v336 = vld [vmem:[%s335] sm:$0xff]
          %v337 = vadd.f32 %v336, %v308
          %338 = vst [vmem:[%s335] sm:$0xff] %v337
        $region44: #{tpu_custom_call.1} parent=27 // pred_fallthru
          _
        %s339 = sand.u32 %s111, 1
        %s340 = scalar_lea.sflag [#allocation4], %s339
        %s341 = sand.u32 %s111, 1
        %s342 = smul.addr %s341, 32
        %s343 = scalar_lea.vmem [#allocation7], %s342
        // Predicated region
        $region45: #{tpu_custom_call.1} parent=27 // pred_check
          %p344 = pneg %p121
        $region46: #{tpu_custom_call.1} parent=27 // pred_check_branch
          %346 = sbr.rel (%p344) target = $region48
        $region47: #{tpu_custom_call.1} parent=27 // pred_region
          %s348 = ssub.s32 512, 512
          %349 = vsyncadd %s340, %s348
          %s350 = smul.addr %s28, 8
          %s351 = smul.addr %s27, 16
          %s352 = sadd.s32 %s350, %s351
          %s353 = smul.addr %s352, 64
          %s354 = scalar_lea.hbm %s2, %s353
          %s355 = sshll.u32 %s343, 4
          %s356 = int_to_ptr.vmem [resolvable:$true] %s355
          %361 = dma.vmem_to_hbm [thread:$0]  %s356, 512, %s354, %s340, 128, 128, 8
        $region48: #{tpu_custom_call.1} parent=27 // pred_fallthru
          _
      $region28: #{tpu_custom_call.1} parent=5 // pred_fallthru
        _
      %p362 = scmp.le.s32.totalorder 2, %s17
      // Predicated region
      $region49: #{tpu_custom_call.1} parent=5 // pred_check
        %p363 = pneg %p362
      $region50: #{tpu_custom_call.1} parent=5 // pred_check_branch
        %365 = sbr.rel (%p363) target = $region52
      $region51: #{tpu_custom_call.1} parent=5 // pred_region
        %s366 = ssub.s32 %s17, 2
        // Predicated region
        $region53: #{tpu_custom_call.1} parent=51 // pred_check
          %p367 = pneg %p127
        $region54: #{tpu_custom_call.1} parent=51 // pred_check_branch
          %369 = sbr.rel (%p367) target = $region56
        $region55: #{tpu_custom_call.1} parent=51 // pred_region
          %s370 = sand.u32 %s112, 1
          %s371 = scalar_lea.sflag [#allocation4], %s370
          %s372 = sand.u32 %s112, 1
          %s373 = smul.addr %s372, 32
          %s374 = scalar_lea.vmem [#allocation7], %s373
          %375 = dma.done %s371, 512
        $region56: #{tpu_custom_call.1} parent=51 // pred_fallthru
          _
      $region52: #{tpu_custom_call.1} parent=5 // pred_fallthru
        _
    $region6: #{tpu_custom_call.1} parent=1 // loop_footer
      %s21 = sadd.s32 1, %s17
    $region7: #{tpu_custom_call.1} parent=1 // loop_footer_branch
      %16 = sbr.rel target = $region3
    $region8: #{tpu_custom_call.1} parent=1 // loop_exit
      _
    %376 = vsyncpa [#allocation3], 1
    %s377 = scalar_lea.sflag [#allocation3], 1
    %378 = vsyncpa %s377, 1
    %379 = vsyncpa [#allocation6], 1
    %s380 = scalar_lea.sflag [#allocation6], 1
    %381 = vsyncpa %s380, 1
    %382 = vsyncpa [#allocation4], 1
    %s383 = scalar_lea.sflag [#allocation4], 1
    %384 = vsyncpa %s383, 1

</llo_original>
